<compile_context>
chip_gen: v5e
topology: v5e:2x2
jax: 0.10.0
libtpu: 0.0.40
codegen_flags: <defaults>
</compile_context>

<pallas_src>
import jax
import jax.numpy as jnp
from jax.experimental import pallas as pl
from jax.experimental.pallas import tpu as pltpu


def _mlp_kernel(xt_ref, w1_ref, b1_ref, w2_ref, b2_ref, w3_ref, b3_ref, out_ref):
    # xt_ref : (F, TB)  bf16   -- batch on lanes
    # w1_ref : (H1, F)  bf16,  b1_ref: (H1, 1) f32
    # w2_ref : (H2, H1) bf16,  b2_ref: (H2, 1) f32
    # w3_ref : (H2, 1)  f32,   b3_ref: (1, 1)  f32
    # out_ref: (1, TB)  f32    -- lane-dense store
    h1 = jnp.dot(w1_ref[...], xt_ref[...], preferred_element_type=jnp.float32)
    h1 = jnp.maximum(h1 + b1_ref[...], 0.0)                                  # (H1, TB) f32

    h2 = jnp.dot(w2_ref[...], h1.astype(jnp.bfloat16),
                 preferred_element_type=jnp.float32)
    h2 = jnp.maximum(h2 + b2_ref[...], 0.0)                                  # (H2, TB) f32

    # Output layer (single unit): VPU multiply + sublane reduce, bias folded in.
    o = jnp.sum(h2 * w3_ref[...], axis=0, keepdims=True) + b3_ref[...]       # (1, TB) f32
    out_ref[...] = o.astype(out_ref.dtype)


def titanic_predictor_forward(x, params, *, tb=256):
    """x: (B, F) f32; params in PyTorch layout: W (out,in), b (out,). Returns (B, 1) f32."""
    w1, b1, w2, b2, w3, b3 = params
    B, F = x.shape
    H1 = w1.shape[0]
    H2 = w2.shape[0]
    assert tb % 128 == 0

    grid_b = pl.cdiv(B, tb)
    b_pad = grid_b * tb

    # Layout plumbing: pad batch to a tile multiple, put batch on the lane axis, bf16 stream.
    x_pad = jnp.pad(x, ((0, b_pad - B), (0, 0)))
    xt = x_pad.T.astype(jnp.bfloat16)                       # (F, B_pad)

    w1b = w1.astype(jnp.bfloat16)                           # (H1, F)
    b1c = b1.reshape(H1, 1).astype(jnp.float32)
    w2b = w2.astype(jnp.bfloat16)                           # (H2, H1)
    b2c = b2.reshape(H2, 1).astype(jnp.float32)
    w3c = w3.reshape(H2, 1).astype(jnp.float32)             # (H2, 1)
    b3c = b3.reshape(1, 1).astype(jnp.float32)

    flops = 2 * b_pad * (F * H1 + H1 * H2 + H2)
    bytes_accessed = (
        xt.size * 2                                          # bf16 activations in
        + (w1b.size + w2b.size) * 2                          # bf16 weights
        + (b1c.size + b2c.size + w3c.size + b3c.size) * 4    # f32 biases / w3
        + b_pad * 4                                          # f32 out
    )

    resident = lambda shape: pl.BlockSpec(shape, lambda i: (0, 0))

    out = pl.pallas_call(
        _mlp_kernel,
        grid=(grid_b,),
        out_shape=jax.ShapeDtypeStruct((1, b_pad), jnp.float32),
        in_specs=[
            pl.BlockSpec((F, tb), lambda i: (0, i)),         # streamed activations
            resident(w1b.shape), resident(b1c.shape),
            resident(w2b.shape), resident(b2c.shape),
            resident(w3c.shape), resident(b3c.shape),
        ],
        out_specs=pl.BlockSpec((1, tb), lambda i: (0, i)),   # lane-dense output row
        compiler_params=pltpu.CompilerParams(
            dimension_semantics=("parallel",),
        ),
        cost_estimate=pl.CostEstimate(
            flops=flops, transcendentals=0, bytes_accessed=bytes_accessed),
    )(xt, w1b, b1c, w2b, b2c, w3c, b3c)

    return out[0, :B].reshape(B, 1)


def init_params(key, num_features):
    """Deterministic init mimicking nn.Linear (uniform +/- 1/sqrt(fan_in)), PyTorch layout."""
    ks = jax.random.split(key, 6)

    def linear(kw, kb, fan_in, fan_out):
        bound = 1.0 / (fan_in ** 0.5)
        w = jax.random.uniform(kw, (fan_out, fan_in), jnp.float32, -bound, bound)
        b = jax.random.uniform(kb, (fan_out,), jnp.float32, -bound, bound)
        return w, b

    w1, b1 = linear(ks[0], ks[1], num_features, 64)
    w2, b2 = linear(ks[2], ks[3], 64, 32)
    w3, b3 = linear(ks[4], ks[5], 32, 1)
    return w1, b1, w2, b2, w3, b3


if __name__ == "__main__":
    key = jax.random.PRNGKey(0)
    k_x, k_p = jax.random.split(key)

    batch = 8
    num_features = 16  # small synthetic Titanic-style feature count

    x = jax.random.normal(k_x, (batch, num_features), jnp.float32)
    params = init_params(k_p, num_features)

    out = titanic_predictor_forward(x, params)
    out = jax.block_until_ready(out)

    # Reference in plain JAX (PyTorch semantics: x @ W.T + b), f32 everywhere.
    w1, b1, w2, b2, w3, b3 = params
    ref = jnp.maximum(x @ w1.T + b1, 0.0)
    ref = jnp.maximum(ref @ w2.T + b2, 0.0)
    ref = ref @ w3.T + b3

    assert out.shape == (batch, 1)
    # bf16 matmul operands -> loosen tolerance vs. the f32 reference.
    assert jnp.allclose(out, ref, atol=2e-2, rtol=2e-2), (out, ref)

    print("KERNEL_OK")
</pallas_src>

<mosaic_0001>
module attributes {stable_mosaic.version = 11 : i64} {
  func.func @_mlp_kernel(%arg0: i32, %arg1: memref<16x256xbf16, #tpu.memory_space<vmem>>, %arg2: memref<64x16xbf16, #tpu.memory_space<vmem>>, %arg3: memref<64x1xf32, #tpu.memory_space<vmem>>, %arg4: memref<32x64xbf16, #tpu.memory_space<vmem>>, %arg5: memref<32x1xf32, #tpu.memory_space<vmem>>, %arg6: memref<32x1xf32, #tpu.memory_space<vmem>>, %arg7: memref<1x1xf32, #tpu.memory_space<vmem>>, %arg8: memref<1x256xf32, #tpu.memory_space<vmem>>) attributes {dimension_semantics = [#tpu.dimension_semantics<parallel>], iteration_bounds = array<i64: 1>, scalar_prefetch = 0 : i64, scratch_operands = 0 : i64, tpu.core_type = #tpu.core_type<tc>, window_params = [{transform_indices = @transform_0, window_bounds = array<i64: 16, 256>}, {pipeline_mode = #tpu.pipeline_mode<synchronous>, transform_indices = @transform_1, window_bounds = array<i64: 64, 16>}, {pipeline_mode = #tpu.pipeline_mode<synchronous>, transform_indices = @transform_2, window_bounds = array<i64: 64, 1>}, {pipeline_mode = #tpu.pipeline_mode<synchronous>, transform_indices = @transform_3, window_bounds = array<i64: 32, 64>}, {pipeline_mode = #tpu.pipeline_mode<synchronous>, transform_indices = @transform_4, window_bounds = array<i64: 32, 1>}, {pipeline_mode = #tpu.pipeline_mode<synchronous>, transform_indices = @transform_5, window_bounds = array<i64: 32, 1>}, {pipeline_mode = #tpu.pipeline_mode<synchronous>, transform_indices = @transform_6, window_bounds = array<i64: 1, 1>}, {transform_indices = @transform_7, window_bounds = array<i64: 1, 256>}]} {
    %c0 = arith.constant 0 : index
    %c0_0 = arith.constant 0 : index
    %0 = vector.load %arg2[%c0, %c0_0] : memref<64x16xbf16, #tpu.memory_space<vmem>>, vector<64x16xbf16>
    %c0_1 = arith.constant 0 : index
    %c0_2 = arith.constant 0 : index
    %1 = vector.load %arg1[%c0_1, %c0_2] : memref<16x256xbf16, #tpu.memory_space<vmem>>, vector<16x256xbf16>
    %cst = arith.constant dense<0.000000e+00> : vector<64x256xf32>
    %2 = tpu.matmul %0, %1, %cst {dimension_numbers = #tpu.dot_dimension_numbers<[1], [0], [0], [1], [0, 0, 1, 1], [], []>} : vector<64x16xbf16>, vector<16x256xbf16>, vector<64x256xf32> -> vector<64x256xf32>
    %c0_3 = arith.constant 0 : index
    %c0_4 = arith.constant 0 : index
    %3 = vector.load %arg3[%c0_3, %c0_4] : memref<64x1xf32, #tpu.memory_space<vmem>>, vector<64x1xf32>
    %4 = vector.broadcast %3 : vector<64x1xf32> to vector<64x256xf32>
    %5 = arith.addf %2, %4 : vector<64x256xf32>
    %cst_5 = arith.constant 0.000000e+00 : f32
    %6 = vector.broadcast %cst_5 : f32 to vector<64x256xf32>
    %7 = arith.maximumf %5, %6 : vector<64x256xf32>
    %c0_6 = arith.constant 0 : index
    %c0_7 = arith.constant 0 : index
    %8 = vector.load %arg4[%c0_6, %c0_7] : memref<32x64xbf16, #tpu.memory_space<vmem>>, vector<32x64xbf16>
    %9 = arith.truncf %7 : vector<64x256xf32> to vector<64x256xbf16>
    %cst_8 = arith.constant dense<0.000000e+00> : vector<32x256xf32>
    %10 = tpu.matmul %8, %9, %cst_8 {dimension_numbers = #tpu.dot_dimension_numbers<[1], [0], [0], [1], [0, 0, 1, 1], [], []>} : vector<32x64xbf16>, vector<64x256xbf16>, vector<32x256xf32> -> vector<32x256xf32>
    %c0_9 = arith.constant 0 : index
    %c0_10 = arith.constant 0 : index
    %11 = vector.load %arg5[%c0_9, %c0_10] : memref<32x1xf32, #tpu.memory_space<vmem>>, vector<32x1xf32>
    %12 = vector.broadcast %11 : vector<32x1xf32> to vector<32x256xf32>
    %13 = arith.addf %10, %12 : vector<32x256xf32>
    %cst_11 = arith.constant 0.000000e+00 : f32
    %14 = vector.broadcast %cst_11 : f32 to vector<32x256xf32>
    %15 = arith.maximumf %13, %14 : vector<32x256xf32>
    %c0_12 = arith.constant 0 : index
    %c0_13 = arith.constant 0 : index
    %16 = vector.load %arg6[%c0_12, %c0_13] : memref<32x1xf32, #tpu.memory_space<vmem>>, vector<32x1xf32>
    %17 = vector.broadcast %16 : vector<32x1xf32> to vector<32x256xf32>
    %18 = arith.mulf %15, %17 : vector<32x256xf32>
    %cst_14 = arith.constant dense<0.000000e+00> : vector<256xf32>
    %19 = vector.multi_reduction <add>, %18, %cst_14 [0] : vector<32x256xf32> to vector<256xf32>
    %20 = vector.shape_cast %19 : vector<256xf32> to vector<1x256xf32>
    %c0_15 = arith.constant 0 : index
    %c0_16 = arith.constant 0 : index
    %21 = vector.load %arg7[%c0_15, %c0_16] : memref<1x1xf32, #tpu.memory_space<vmem>>, vector<1x1xf32>
    %22 = vector.broadcast %21 : vector<1x1xf32> to vector<1x256xf32>
    %23 = arith.addf %20, %22 : vector<1x256xf32>
    %c0_17 = arith.constant 0 : index
    %c0_18 = arith.constant 0 : index
    %24 = vector.load %arg8[%c0_17, %c0_18] : memref<1x256xf32, #tpu.memory_space<vmem>>, vector<1x256xf32>
    tpu.vector_store %arg8[%c0_17, %c0_18], %23 {strides = array<i32>} : memref<1x256xf32, #tpu.memory_space<vmem>>, vector<1x256xf32>,
    return
  }
  func.func @transform_0(%arg0: i32) -> (i32, i32) {
    %c0_i32 = arith.constant 0 : i32
    %c0_i32_0 = arith.constant 0 : i32
    return %c0_i32, %arg0 : i32, i32
  }
  func.func @transform_1(%arg0: i32) -> (i32, i32) {
    %c0_i32 = arith.constant 0 : i32
    %c0_i32_0 = arith.constant 0 : i32
    %c0_i32_1 = arith.constant 0 : i32
    return %c0_i32, %c0_i32_0 : i32, i32
  }
  func.func @transform_2(%arg0: i32) -> (i32, i32) {
    %c0_i32 = arith.constant 0 : i32
    %c0_i32_0 = arith.constant 0 : i32
    %c0_i32_1 = arith.constant 0 : i32
    return %c0_i32, %c0_i32_0 : i32, i32
  }
  func.func @transform_3(%arg0: i32) -> (i32, i32) {
    %c0_i32 = arith.constant 0 : i32
    %c0_i32_0 = arith.constant 0 : i32
    %c0_i32_1 = arith.constant 0 : i32
    return %c0_i32, %c0_i32_0 : i32, i32
  }
  func.func @transform_4(%arg0: i32) -> (i32, i32) {
    %c0_i32 = arith.constant 0 : i32
    %c0_i32_0 = arith.constant 0 : i32
    %c0_i32_1 = arith.constant 0 : i32
    return %c0_i32, %c0_i32_0 : i32, i32
  }
  func.func @transform_5(%arg0: i32) -> (i32, i32) {
    %c0_i32 = arith.constant 0 : i32
    %c0_i32_0 = arith.constant 0 : i32
    %c0_i32_1 = arith.constant 0 : i32
    return %c0_i32, %c0_i32_0 : i32, i32
  }
  func.func @transform_6(%arg0: i32) -> (i32, i32) {
    %c0_i32 = arith.constant 0 : i32
    %c0_i32_0 = arith.constant 0 : i32
    %c0_i32_1 = arith.constant 0 : i32
    return %c0_i32, %c0_i32_0 : i32, i32
  }
  func.func @transform_7(%arg0: i32) -> (i32, i32) {
    %c0_i32 = arith.constant 0 : i32
    %c0_i32_0 = arith.constant 0 : i32
    return %c0_i32, %arg0 : i32, i32
  }
}

</mosaic_0001>

<llo_original>
// kernel: tpu_custom_call.1
$region0: #{tpu_custom_call.1}
  #allocation0 [shape = 'u32[]', space=smem, size = 0x4, offset = 0x4, fixed_abs, tag = 'smem constant byte address 0x4 - core index']
  #allocation1 [shape = 'u32[72,128]{1,0:T(1,128)}', space=vmem, size = 0x9000, scoped, tag = 'internal scratch']
  #allocation2 [shape = 'f32[1,1]{1,0:T(1,128)S(1)}', space=vmem, size = 0x200, scoped, tag = 'scoped memory for tpu_custom_call.1']
  %s0 = inlined_call_operand.vmem [shape: bf16[16,256], index: 0, kind: input, shape index: {}]
  %s1 = inlined_call_operand.vmem [shape: bf16[64,16], index: 1, kind: input, shape index: {}]
  %s2 = inlined_call_operand.vmem [shape: f32[64,1], index: 2, kind: input, shape index: {}]
  %s3 = inlined_call_operand.vmem [shape: bf16[32,64], index: 3, kind: input, shape index: {}]
  %s4 = inlined_call_operand.vmem [shape: f32[32,1], index: 4, kind: input, shape index: {}]
  %s5 = inlined_call_operand.vmem [shape: f32[32,1], index: 5, kind: input, shape index: {}]
  %s6 = inlined_call_operand.<no memory space> [shape: f32[1,1], index: 6, kind: input, shape index: {}]
  %s7 = inlined_call_operand.hbm [shape: f32[1,256], index: 7, kind: output, shape index: {}]
  %s8 = sld [smem:[#allocation0]]
  $region38: #{tpu_custom_call.1} parent=0
    _
  %s10 = ssub.s32 1, %s8
  %s11 = scalar_select 0, %s10, %s8
  %v12 = vstv %s6
  %13 = vst [vmem:[#allocation2] sm:$0x1] %v12
  $region1: #{tpu_custom_call.1} parent=0
    #allocation3 [shape = 'u8[1024]{0}', space=vmem, size = 0x400, scoped, tag = 'output window, operand 0, single buffered']
    #allocation4 [shape = 's32[1]{0}', space=sflag, size = 0x4, scoped, tag = 'scoped memory for tpu_custom_call.1']
    %14 = vsyncpa [#allocation4], 0
    // Predicated region
    $region2: #{tpu_custom_call.1} parent=1 // pred_check
      _
    $region3: #{tpu_custom_call.1} parent=1 // pred_check_branch
      %16 = sbr.rel (0) target = $region5
    $region4: #{tpu_custom_call.1} parent=1 // pred_region
      _
    $region5: #{tpu_custom_call.1} parent=1 // pred_fallthru
      _
    // Predicated region
    $region6: #{tpu_custom_call.1} parent=1 // pred_check
      _
    $region7: #{tpu_custom_call.1} parent=1 // pred_check_branch
      %18 = sbr.rel (0) target = $region9
    $region8: #{tpu_custom_call.1} parent=1 // pred_region
      _
    $region9: #{tpu_custom_call.1} parent=1 // pred_fallthru
      _
    // Predicated region
    $region10: #{tpu_custom_call.1} parent=1 // pred_check
      _
    $region11: #{tpu_custom_call.1} parent=1 // pred_check_branch
      %20 = sbr.rel (0) target = $region13
    $region12: #{tpu_custom_call.1} parent=1 // pred_region
      _
    $region13: #{tpu_custom_call.1} parent=1 // pred_fallthru
      _
    // Predicated region
    $region14: #{tpu_custom_call.1} parent=1 // pred_check
      _
    $region15: #{tpu_custom_call.1} parent=1 // pred_check_branch
      %22 = sbr.rel (0) target = $region17
    $region16: #{tpu_custom_call.1} parent=1 // pred_region
      _
    $region17: #{tpu_custom_call.1} parent=1 // pred_fallthru
      _
    // Predicated region
    $region18: #{tpu_custom_call.1} parent=1 // pred_check
      _
    $region19: #{tpu_custom_call.1} parent=1 // pred_check_branch
      %24 = sbr.rel (0) target = $region21
    $region20: #{tpu_custom_call.1} parent=1 // pred_region
      _
    $region21: #{tpu_custom_call.1} parent=1 // pred_fallthru
      _
    // Predicated region
    $region22: #{tpu_custom_call.1} parent=1 // pred_check
      _
    $region23: #{tpu_custom_call.1} parent=1 // pred_check_branch
      %26 = sbr.rel (0) target = $region25
    $region24: #{tpu_custom_call.1} parent=1 // pred_region
      _
    $region25: #{tpu_custom_call.1} parent=1 // pred_fallthru
      _
    // Predicated region
    $region26: #{tpu_custom_call.1} parent=1 // pred_check
      _
    $region27: #{tpu_custom_call.1} parent=1 // pred_check_branch
      %28 = sbr.rel (0) target = $region29
    $region28: #{tpu_custom_call.1} parent=1 // pred_region
      _
    $region29: #{tpu_custom_call.1} parent=1 // pred_fallthru
      _
    %v30 = vld [vmem:[%s1] sm:$0xf]
    %v31 = vld [vmem:[%s1 + $0x4] sm:$0xf]
    %v32 = vld [vmem:[%s1 + $0x8] sm:$0xf]
    %v33 = vld [vmem:[%s1 + $0xc] sm:$0xf]
    %v34 = vld [vmem:[%s1 + $0x10] sm:$0xf]
    %v35 = vld [vmem:[%s1 + $0x14] sm:$0xf]
    %v36 = vld [vmem:[%s1 + $0x18] sm:$0xf]
    %v37 = vld [vmem:[%s1 + $0x1c] sm:$0xf]
    %v38 = vld [vmem:[%s0] sm:$0xff]
    %v39 = vld [vmem:[%s0 + $0x8] sm:$0xff]
    %v40 = vld [vmem:[%s2] sm:$0xff]
    %v41 = vld [vmem:[%s2 + $0x8] sm:$0xff]
    %v42 = vld [vmem:[%s2 + $0x10] sm:$0xff]
    %v43 = vld [vmem:[%s2 + $0x18] sm:$0xff]
    %v44 = vld [vmem:[%s2 + $0x20] sm:$0xff]
    %v45 = vld [vmem:[%s2 + $0x28] sm:$0xff]
    %v46 = vld [vmem:[%s2 + $0x30] sm:$0xff]
    %v47 = vld [vmem:[%s2 + $0x38] sm:$0xff]
    %49 = vset.pattern.permute.xlu0 0
    %50 = vperm.xlu0 %49, %v40
    %v51 = vpop.permute.xlu0 %50
    %54 = vset.pattern.permute.xlu0 0
    %55 = vperm.xlu0 %54, %v41
    %v56 = vpop.permute.xlu0 %55
    %59 = vset.pattern.permute.xlu0 0
    %60 = vperm.xlu0 %59, %v42
    %v61 = vpop.permute.xlu0 %60
    %64 = vset.pattern.permute.xlu0 0
    %65 = vperm.xlu0 %64, %v43
    %v66 = vpop.permute.xlu0 %65
    %69 = vset.pattern.permute.xlu0 0
    %70 = vperm.xlu0 %69, %v44
    %v71 = vpop.permute.xlu0 %70
    %74 = vset.pattern.permute.xlu0 0
    %75 = vperm.xlu0 %74, %v45
    %v76 = vpop.permute.xlu0 %75
    %79 = vset.pattern.permute.xlu0 0
    %80 = vperm.xlu0 %79, %v46
    %v81 = vpop.permute.xlu0 %80
    %84 = vset.pattern.permute.xlu0 0
    %85 = vperm.xlu0 %84, %v47
    %v86 = vpop.permute.xlu0 %85
    %v96 = vunpack.c.l.b16 %v30
    %v97 = vunpack.c.l.b16 %v31
    %v98 = vunpack.c.l.b16 %v32
    %v99 = vunpack.c.l.b16 %v33
    %v100 = vunpack.c.l.b16 %v34
    %v101 = vunpack.c.l.b16 %v35
    %v102 = vunpack.c.l.b16 %v36
    %v103 = vunpack.c.l.b16 %v37
    %v104 = vpack.c.b16 %v97, %v96
    %v105 = vpack.c.b16 %v99, %v98
    %v106 = vpack.c.b16 %v101, %v100
    %v107 = vpack.c.b16 %v103, %v102
    %v110 = vunpack.c.l.b16 %v38
    %v111 = vunpack.c.h.b16 %v38
    %v112 = vunpack.c.l.b16 %v39
    %v113 = vunpack.c.h.b16 %v39
    %v114 = vpack.c.b16 %v112, %v110
    %v115 = vpack.c.b16 %v113, %v111
    %vm118 = vcmask 130048
    %v120 = vsel %vm118, %v104, 0
    %v123 = vsel %vm118, %v105, 0
    %v126 = vsel %vm118, %v106, 0
    %v129 = vsel %vm118, %v107, 0
    %131 = vmatpush.bf16.msra.mxu0 0
    %132 = vmatpush.bf16.msra.mxu0 0
    %133 = vmatpush.bf16.msra.mxu0 0
    %134 = vmatpush.bf16.msra.mxu0 0
    %135 = vmatpush.bf16.msra.mxu0 0
    %136 = vmatpush.bf16.msra.mxu0 0
    %137 = vmatpush.bf16.msra.mxu0 0
    %138 = vmatpush.bf16.msra.mxu0 %v114
    %139 = vmatmul.bf16.gmra.mxu0 %v120
    %v140 = vpop.f32.mrf.mxu0
    %v141 = vadd.f32 %v51, %v140
    %v142 = vpop.f32.mrf.mxu0
    %v143 = vadd.f32 %v56, %v142
    %144 = vmatmul.bf16.gmra.mxu0 %v123
    %v145 = vpop.f32.mrf.mxu0
    %v146 = vadd.f32 %v61, %v145
    %v147 = vpop.f32.mrf.mxu0
    %v148 = vadd.f32 %v66, %v147
    %149 = vmatmul.bf16.gmra.mxu0 %v126
    %v150 = vpop.f32.mrf.mxu0
    %v151 = vadd.f32 %v71, %v150
    %v152 = vpop.f32.mrf.mxu0
    %v153 = vadd.f32 %v76, %v152
    %154 = vmatmul.bf16.gmra.mxu0 %v129
    %v155 = vpop.f32.mrf.mxu0
    %v156 = vadd.f32 %v81, %v155
    %v157 = vpop.f32.mrf.mxu0
    %v158 = vadd.f32 %v86, %v157
    %159 = vdwg.mxu0
    %160 = vmatpush.bf16.msra.mxu0 0
    %161 = vmatpush.bf16.msra.mxu0 0
    %162 = vmatpush.bf16.msra.mxu0 0
    %163 = vmatpush.bf16.msra.mxu0 0
    %164 = vmatpush.bf16.msra.mxu0 0
    %165 = vmatpush.bf16.msra.mxu0 0
    %166 = vmatpush.bf16.msra.mxu0 0
    %167 = vmatpush.bf16.msra.mxu0 %v115
    %168 = vmatmul.bf16.gmra.mxu0 %v120
    %v169 = vpop.f32.mrf.mxu0
    %v170 = vadd.f32 %v51, %v169
    %v171 = vpop.f32.mrf.mxu0
    %v172 = vadd.f32 %v56, %v171
    %173 = vmatmul.bf16.gmra.mxu0 %v123
    %v174 = vpop.f32.mrf.mxu0
    %v175 = vadd.f32 %v61, %v174
    %v176 = vpop.f32.mrf.mxu0
    %v177 = vadd.f32 %v66, %v176
    %178 = vmatmul.bf16.gmra.mxu0 %v126
    %v179 = vpop.f32.mrf.mxu0
    %v180 = vadd.f32 %v71, %v179
    %v181 = vpop.f32.mrf.mxu0
    %v182 = vadd.f32 %v76, %v181
    %183 = vmatmul.bf16.gmra.mxu0 %v129
    %v184 = vpop.f32.mrf.mxu0
    %v185 = vadd.f32 %v81, %v184
    %v186 = vpop.f32.mrf.mxu0
    %v187 = vadd.f32 %v86, %v186
    %188 = vdwg.mxu0
    %v189 = vmax.f32 %v141, 0.0
    %v190 = vmax.f32 %v170, 0.0
    %v191 = vmax.f32 %v143, 0.0
    %v192 = vmax.f32 %v172, 0.0
    %v193 = vmax.f32 %v146, 0.0
    %v194 = vmax.f32 %v175, 0.0
    %v195 = vmax.f32 %v148, 0.0
    %v196 = vmax.f32 %v177, 0.0
    %v197 = vmax.f32 %v151, 0.0
    %v198 = vmax.f32 %v180, 0.0
    %v199 = vmax.f32 %v153, 0.0
    %v200 = vmax.f32 %v182, 0.0
    %v201 = vmax.f32 %v156, 0.0
    %v202 = vmax.f32 %v185, 0.0
    %v203 = vmax.f32 %v158, 0.0
    %v204 = vmax.f32 %v187, 0.0
    %v205 = vld [vmem:[%s3] sm:$0xf]
    %v206 = vld [vmem:[%s3 + $0x4] sm:$0xf]
    %v207 = vld [vmem:[%s3 + $0x8] sm:$0xf]
    %v208 = vld [vmem:[%s3 + $0xc] sm:$0xf]
    %v209 = vpack.c.bf16 %v191, %v189
    %v210 = vpack.c.bf16 %v192, %v190
    %v211 = vpack.c.bf16 %v195, %v193
    %v212 = vpack.c.bf16 %v196, %v194
    %v213 = vpack.c.bf16 %v199, %v197
    %v214 = vpack.c.bf16 %v200, %v198
    %v215 = vpack.c.bf16 %v203, %v201
    %v216 = vpack.c.bf16 %v204, %v202
    %v217 = vld [vmem:[%s4] sm:$0xff]
    %v218 = vld [vmem:[%s4 + $0x8] sm:$0xff]
    %v219 = vld [vmem:[%s4 + $0x10] sm:$0xff]
    %v220 = vld [vmem:[%s4 + $0x18] sm:$0xff]
    %222 = vset.pattern.permute.xlu0 0
    %223 = vperm.xlu0 %222, %v217
    %v224 = vpop.permute.xlu0 %223
    %227 = vset.pattern.permute.xlu0 0
    %228 = vperm.xlu0 %227, %v218
    %v229 = vpop.permute.xlu0 %228
    %232 = vset.pattern.permute.xlu0 0
    %233 = vperm.xlu0 %232, %v219
    %v234 = vpop.permute.xlu0 %233
    %237 = vset.pattern.permute.xlu0 0
    %238 = vperm.xlu0 %237, %v220
    %v239 = vpop.permute.xlu0 %238
    %v245 = vunpack.c.l.b16 %v205
    %v246 = vunpack.c.l.b16 %v206
    %v247 = vunpack.c.l.b16 %v207
    %v248 = vunpack.c.l.b16 %v208
    %v249 = vpack.c.b16 %v246, %v245
    %v250 = vpack.c.b16 %v248, %v247
    %vm251 = vcmask 523264
    %v253 = vsel %vm251, %v249, 0
    %v256 = vsel %vm251, %v250, 0
    %258 = vmatpush.bf16.msra.mxu0 0
    %259 = vmatpush.bf16.msra.mxu0 0
    %260 = vmatpush.bf16.msra.mxu0 0
    %261 = vmatpush.bf16.msra.mxu0 0
    %262 = vmatpush.bf16.msra.mxu0 %v215
    %263 = vmatpush.bf16.msra.mxu0 %v213
    %264 = vmatpush.bf16.msra.mxu0 %v211
    %265 = vmatpush.bf16.msra.mxu0 %v209
    %266 = vmatmul.bf16.gmra.mxu0 %v253
    %v267 = vpop.f32.mrf.mxu0
    %v268 = vadd.f32 %v224, %v267
    %v269 = vpop.f32.mrf.mxu0
    %v270 = vadd.f32 %v229, %v269
    %271 = vmatmul.bf16.gmra.mxu0 %v256
    %v272 = vpop.f32.mrf.mxu0
    %v273 = vadd.f32 %v234, %v272
    %v274 = vpop.f32.mrf.mxu0
    %v275 = vadd.f32 %v239, %v274
    %276 = vdwg.mxu0
    %277 = vmatpush.bf16.msra.mxu0 0
    %278 = vmatpush.bf16.msra.mxu0 0
    %279 = vmatpush.bf16.msra.mxu0 0
    %280 = vmatpush.bf16.msra.mxu0 0
    %281 = vmatpush.bf16.msra.mxu0 %v216
    %282 = vmatpush.bf16.msra.mxu0 %v214
    %283 = vmatpush.bf16.msra.mxu0 %v212
    %284 = vmatpush.bf16.msra.mxu0 %v210
    %285 = vmatmul.bf16.gmra.mxu0 %v253
    %v286 = vpop.f32.mrf.mxu0
    %v287 = vadd.f32 %v224, %v286
    %v288 = vpop.f32.mrf.mxu0
    %v289 = vadd.f32 %v229, %v288
    %290 = vmatmul.bf16.gmra.mxu0 %v256
    %v291 = vpop.f32.mrf.mxu0
    %v292 = vadd.f32 %v234, %v291
    %v293 = vpop.f32.mrf.mxu0
    %v294 = vadd.f32 %v239, %v293
    %295 = vdwg.mxu0
    %v296 = vmax.f32 %v268, 0.0
    %v297 = vmax.f32 %v287, 0.0
    %v298 = vmax.f32 %v270, 0.0
    %v299 = vmax.f32 %v289, 0.0
    %v300 = vmax.f32 %v273, 0.0
    %v301 = vmax.f32 %v292, 0.0
    %v302 = vmax.f32 %v275, 0.0
    %v303 = vmax.f32 %v294, 0.0
    %v304 = vld [vmem:[%s5] sm:$0xff]
    %v305 = vld [vmem:[%s5 + $0x8] sm:$0xff]
    %v306 = vld [vmem:[%s5 + $0x10] sm:$0xff]
    %v307 = vld [vmem:[%s5 + $0x18] sm:$0xff]
    %309 = vset.pattern.permute.xlu0 0
    %310 = vperm.xlu0 %309, %v304
    %v311 = vpop.permute.xlu0 %310
    %314 = vset.pattern.permute.xlu0 0
    %315 = vperm.xlu0 %314, %v305
    %v316 = vpop.permute.xlu0 %315
    %319 = vset.pattern.permute.xlu0 0
    %320 = vperm.xlu0 %319, %v306
    %v321 = vpop.permute.xlu0 %320
    %324 = vset.pattern.permute.xlu0 0
    %325 = vperm.xlu0 %324, %v307
    %v326 = vpop.permute.xlu0 %325
    %v328 = vmul.f32 %v296, %v311
    %v329 = vmul.f32 %v297, %v311
    %v330 = vmul.f32 %v298, %v316
    %v331 = vmul.f32 %v299, %v316
    %v332 = vmul.f32 %v300, %v321
    %v333 = vmul.f32 %v301, %v321
    %v334 = vmul.f32 %v302, %v326
    %v335 = vmul.f32 %v303, %v326
    %v336 = vadd.f32 %v328, %v330
    %v337 = vadd.f32 %v336, %v332
    %v338 = vadd.f32 %v337, %v334
    %v339 = vrot.slane %v338, 4
    %v340 = vadd.f32 %v338, %v339
    %v341 = vrot.slane %v340, 2
    %v342 = vadd.f32 %v340, %v341
    %v343 = vrot.slane %v342, 1
    %v344 = vadd.f32 %v342, %v343
    %v345 = vadd.f32 %v329, %v331
    %v346 = vadd.f32 %v345, %v333
    %v347 = vadd.f32 %v346, %v335
    %v348 = vrot.slane %v347, 4
    %v349 = vadd.f32 %v347, %v348
    %v350 = vrot.slane %v349, 2
    %v351 = vadd.f32 %v349, %v350
    %v352 = vrot.slane %v351, 1
    %v353 = vadd.f32 %v351, %v352
    %v354 = vld [vmem:[#allocation2] sm:$0x1]
    %356 = vset.pattern.permute.xlu0 0
    %357 = vperm.xlu0 %356, %v354
    %v358 = vpop.permute.xlu0 %357
    %v360 = vperm.slane %v358, 0
    %v361 = vadd.f32 %v344, %v360
    %v362 = vadd.f32 %v353, %v360
    %v365 = vrot.slane %v362, 7
    %vm366 = vcmask 1040384
    %v367 = vsel %vm366, %v361, %v365
    %v369 = vlaneseq
    %vm370 = vcmp.ge.s32.totalorder %v369, 0
    %vm371 = vcmp.lt.s32.totalorder %v369, 256
    %vm372 = vmand %vm370, %vm371
    %373 = vst.msk [vmem:[#allocation3] sm:$0x3] %vm372, %v367
    // Predicated region
    $region30: #{tpu_custom_call.1} parent=1 // pred_check
      _
    $region31: #{tpu_custom_call.1} parent=1 // pred_check_branch
      %375 = sbr.rel (0) target = $region33
    $region32: #{tpu_custom_call.1} parent=1 // pred_region
      %377 = vsyncadd [#allocation4], 0
      %s379 = sshll.u32 [#allocation3], 4
      %s380 = int_to_ptr.vmem [resolvable:$true] %s379
      %s381 = sshll.u32 %s7, 4
      %s382 = int_to_ptr.hbm [resolvable:$true] %s381
      %384 = dma.vmem_to_hbm [thread:$0]  %s380, 32, %s382, [#allocation4]
    $region33: #{tpu_custom_call.1} parent=1 // pred_fallthru
      _
    // Predicated region
    $region34: #{tpu_custom_call.1} parent=1 // pred_check
      _
    $region35: #{tpu_custom_call.1} parent=1 // pred_check_branch
      %386 = sbr.rel (0) target = $region37
    $region36: #{tpu_custom_call.1} parent=1 // pred_region
      %388 = dma.done [#allocation4], 32
    $region37: #{tpu_custom_call.1} parent=1 // pred_fallthru
      _
    %389 = vsyncpa [#allocation4], 1

</llo_original>
